<compile_context>
chip_gen: v5e
topology: v5e:2x2
jax: 0.10.0
libtpu: 0.0.40
codegen_flags: <defaults>
</compile_context>

<pallas_src>
import functools

import jax
import jax.numpy as jnp
from jax.experimental import pallas as pl
from jax.experimental.pallas import tpu as pltpu

NUM_STATES = 768
# TODO(synk): NUM_ACTIONS is undefined in the source snippet; pick 4 deterministically.
NUM_ACTIONS = 4
H1 = 50
H2 = 30

DEFAULT_BLOCK_B = 2048  # f32 tile = 6 MiB; x2 double-buffer + temps < 40 MiB scoped VMEM


def _cdiv(a, b):
    return -(-a // b)


def _round_up(n, m):
    return ((n + m - 1) // m) * m


def _choose_tile(batch, block_b):
    """Balanced batch tile, sublane-aligned, >=2 tiles when B permits (v7x megacore)."""
    min_tiles = 2 if batch >= 16 else 1
    n_tiles = max(min_tiles, _cdiv(batch, block_b))
    return _round_up(_cdiv(batch, n_tiles), 8)


def mlp_kernel(x_ref, w1_ref, b1_ref, w2_ref, b2_ref, w3_ref, b3_ref, o_ref):
    cdt = jnp.bfloat16
    # Per-tile bf16 cast of x happens here (no extra HBM pass in the wrapper).
    x = x_ref[...].astype(cdt)
    # Layer 1: x @ W1 + b1, ReLU   (bf16 matmul, f32 accumulation)
    h1 = jnp.dot(x, w1_ref[...].astype(cdt), preferred_element_type=jnp.float32)
    h1 = jnp.maximum(h1 + b1_ref[...], 0.0)
    # Layer 2: h1 @ W2 + b2, ReLU
    h2 = jnp.dot(h1.astype(cdt), w2_ref[...].astype(cdt),
                 preferred_element_type=jnp.float32)
    h2 = jnp.maximum(h2 + b2_ref[...], 0.0)
    # Output layer: h2 @ W3 + b3  (no activation -> "action_prob" logits)
    o = jnp.dot(h2.astype(cdt), w3_ref[...].astype(cdt),
                preferred_element_type=jnp.float32) + b3_ref[...]
    o_ref[...] = o.astype(o_ref.dtype)


@functools.partial(jax.jit, static_argnames=("block_b",))
def net_forward(x, params, *, block_b=DEFAULT_BLOCK_B):
    """x: [B, NUM_STATES] float32 -> [B, NUM_ACTIONS] float32."""
    w1, b1, w2, b2, w3, b3 = params
    B = x.shape[0]

    tb = _choose_tile(B, block_b)
    grid = (_cdiv(B, tb),)   # ragged last tile is masked by Pallas (rows are independent)

    batched = lambda shape: pl.BlockSpec(shape, lambda i: (i, 0))
    resident = lambda shape: pl.BlockSpec(shape, lambda i: (0, 0))

    flops = 2 * B * (NUM_STATES * H1 + H1 * H2 + H2 * NUM_ACTIONS)
    bytes_accessed = (
        B * NUM_STATES * 4                                    # x (f32, read once)
        + (NUM_STATES * H1 + H1 * H2 + H2 * NUM_ACTIONS) * 4  # weights (f32, resident)
        + (H1 + H2 + NUM_ACTIONS) * 4                         # biases (f32)
        + B * NUM_ACTIONS * 4                                 # output (f32)
    )

    out = pl.pallas_call(
        mlp_kernel,
        out_shape=jax.ShapeDtypeStruct((B, NUM_ACTIONS), jnp.float32),
        grid=grid,
        in_specs=[
            batched((tb, NUM_STATES)),
            resident((NUM_STATES, H1)),
            resident((1, H1)),
            resident((H1, H2)),
            resident((1, H2)),
            resident((H2, NUM_ACTIONS)),
            resident((1, NUM_ACTIONS)),
        ],
        out_specs=batched((tb, NUM_ACTIONS)),
        compiler_params=pltpu.CompilerParams(
            dimension_semantics=("parallel",),
            vmem_limit_bytes=40 << 20,
        ),
        cost_estimate=pl.CostEstimate(
            flops=flops, transcendentals=0, bytes_accessed=bytes_accessed
        ),
    )(x, w1, b1, w2, b2, w3, b3)

    return out


def init_params(key):
    """Deterministic init matching the PyTorch module:
       weights ~ Normal(0, 0.1); biases follow nn.Linear default
       uniform(-1/sqrt(fan_in), 1/sqrt(fan_in))."""
    ks = jax.random.split(key, 6)
    # Stored as [in, out] (transpose of PyTorch's [out, in]).
    w1 = 0.1 * jax.random.normal(ks[0], (NUM_STATES, H1), jnp.float32)
    w2 = 0.1 * jax.random.normal(ks[1], (H1, H2), jnp.float32)
    w3 = 0.1 * jax.random.normal(ks[2], (H2, NUM_ACTIONS), jnp.float32)
    b1 = jax.random.uniform(ks[3], (1, H1), jnp.float32,
                            -1.0 / jnp.sqrt(NUM_STATES), 1.0 / jnp.sqrt(NUM_STATES))
    b2 = jax.random.uniform(ks[4], (1, H2), jnp.float32,
                            -1.0 / jnp.sqrt(H1), 1.0 / jnp.sqrt(H1))
    b3 = jax.random.uniform(ks[5], (1, NUM_ACTIONS), jnp.float32,
                            -1.0 / jnp.sqrt(H2), 1.0 / jnp.sqrt(H2))
    return (w1, b1, w2, b2, w3, b3)


def reference_forward(x, params, compute_dtype=jnp.bfloat16):
    """Pure-JAX reference with the same precision choices as the kernel."""
    w1, b1, w2, b2, w3, b3 = params
    cdt = compute_dtype
    h1 = jnp.dot(x.astype(cdt), w1.astype(cdt),
                 preferred_element_type=jnp.float32)
    h1 = jnp.maximum(h1 + b1, 0.0)
    h2 = jnp.dot(h1.astype(cdt), w2.astype(cdt),
                 preferred_element_type=jnp.float32)
    h2 = jnp.maximum(h2 + b2, 0.0)
    return jnp.dot(h2.astype(cdt), w3.astype(cdt),
                   preferred_element_type=jnp.float32) + b3


def reference_forward_f32(x, params):
    w1, b1, w2, b2, w3, b3 = params
    h1 = jnp.maximum(x @ w1 + b1, 0.0)
    h2 = jnp.maximum(h1 @ w2 + b2, 0.0)
    return h2 @ w3 + b3


if __name__ == "__main__":
    key = jax.random.PRNGKey(0)
    pkey, xkey = jax.random.split(key)
    params = init_params(pkey)

    B = 8
    x = jax.random.normal(xkey, (B, NUM_STATES), jnp.float32)

    out = net_forward(x, params)
    out = jax.block_until_ready(out)
    assert out.shape == (B, NUM_ACTIONS)

    # Precision-matched reference (bf16 matmuls, f32 accumulation).
    ref_bf16 = reference_forward(x, params)
    assert jnp.allclose(out, ref_bf16, atol=1e-2, rtol=1e-2), "mismatch vs bf16 reference"

    # Full-f32 reference: semantics check with looser tolerance (bf16 matmuls in kernel).
    ref_f32 = reference_forward_f32(x, params)
    assert jnp.allclose(out, ref_f32, atol=1e-1, rtol=5e-2), "mismatch vs f32 reference"

    # Exercise a ragged / multi-tile batch as well (covers masked-tail path).
    B2 = 37
    x2 = jax.random.normal(xkey, (B2, NUM_STATES), jnp.float32)
    out2 = jax.block_until_ready(net_forward(x2, params))
    ref2 = reference_forward(x2, params)
    assert out2.shape == (B2, NUM_ACTIONS)
    assert jnp.allclose(out2, ref2, atol=1e-2, rtol=1e-2), "mismatch on ragged batch"

    print("KERNEL_OK")
</pallas_src>

<mosaic_0001>
module attributes {stable_mosaic.version = 11 : i64} {
  func.func @mlp_kernel(%arg0: i32, %arg1: memref<8x768xf32, #tpu.memory_space<vmem>>, %arg2: memref<768x50xf32, #tpu.memory_space<vmem>>, %arg3: memref<1x50xf32, #tpu.memory_space<vmem>>, %arg4: memref<50x30xf32, #tpu.memory_space<vmem>>, %arg5: memref<1x30xf32, #tpu.memory_space<vmem>>, %arg6: memref<30x4xf32, #tpu.memory_space<vmem>>, %arg7: memref<1x4xf32, #tpu.memory_space<vmem>>, %arg8: memref<8x4xf32, #tpu.memory_space<vmem>>) attributes {dimension_semantics = [#tpu.dimension_semantics<parallel>], iteration_bounds = array<i64: 1>, scalar_prefetch = 0 : i64, scratch_operands = 0 : i64, tpu.core_type = #tpu.core_type<tc>, window_params = [{transform_indices = @transform_0, window_bounds = array<i64: 8, 768>}, {pipeline_mode = #tpu.pipeline_mode<synchronous>, transform_indices = @transform_1, window_bounds = array<i64: 768, 50>}, {pipeline_mode = #tpu.pipeline_mode<synchronous>, transform_indices = @transform_2, window_bounds = array<i64: 1, 50>}, {pipeline_mode = #tpu.pipeline_mode<synchronous>, transform_indices = @transform_3, window_bounds = array<i64: 50, 30>}, {pipeline_mode = #tpu.pipeline_mode<synchronous>, transform_indices = @transform_4, window_bounds = array<i64: 1, 30>}, {pipeline_mode = #tpu.pipeline_mode<synchronous>, transform_indices = @transform_5, window_bounds = array<i64: 30, 4>}, {pipeline_mode = #tpu.pipeline_mode<synchronous>, transform_indices = @transform_6, window_bounds = array<i64: 1, 4>}, {transform_indices = @transform_7, window_bounds = array<i64: 8, 4>}]} {
    %c0 = arith.constant 0 : index
    %c0_0 = arith.constant 0 : index
    %0 = vector.load %arg1[%c0, %c0_0] : memref<8x768xf32, #tpu.memory_space<vmem>>, vector<8x768xf32>
    %1 = arith.truncf %0 : vector<8x768xf32> to vector<8x768xbf16>
    %c0_1 = arith.constant 0 : index
    %c0_2 = arith.constant 0 : index
    %2 = vector.load %arg2[%c0_1, %c0_2] : memref<768x50xf32, #tpu.memory_space<vmem>>, vector<768x50xf32>
    %3 = arith.truncf %2 : vector<768x50xf32> to vector<768x50xbf16>
    %cst = arith.constant dense<0.000000e+00> : vector<8x50xf32>
    %4 = tpu.matmul %1, %3, %cst {dimension_numbers = #tpu.dot_dimension_numbers<[1], [0], [0], [1], [0, 0, 1, 1], [], []>} : vector<8x768xbf16>, vector<768x50xbf16>, vector<8x50xf32> -> vector<8x50xf32>
    %c0_3 = arith.constant 0 : index
    %c0_4 = arith.constant 0 : index
    %5 = vector.load %arg3[%c0_3, %c0_4] : memref<1x50xf32, #tpu.memory_space<vmem>>, vector<1x50xf32>
    %6 = vector.broadcast %5 : vector<1x50xf32> to vector<8x50xf32>
    %7 = arith.addf %4, %6 : vector<8x50xf32>
    %cst_5 = arith.constant 0.000000e+00 : f32
    %8 = vector.broadcast %cst_5 : f32 to vector<8x50xf32>
    %9 = arith.maximumf %7, %8 : vector<8x50xf32>
    %10 = arith.truncf %9 : vector<8x50xf32> to vector<8x50xbf16>
    %c0_6 = arith.constant 0 : index
    %c0_7 = arith.constant 0 : index
    %11 = vector.load %arg4[%c0_6, %c0_7] : memref<50x30xf32, #tpu.memory_space<vmem>>, vector<50x30xf32>
    %12 = arith.truncf %11 : vector<50x30xf32> to vector<50x30xbf16>
    %cst_8 = arith.constant dense<0.000000e+00> : vector<8x30xf32>
    %13 = tpu.matmul %10, %12, %cst_8 {dimension_numbers = #tpu.dot_dimension_numbers<[1], [0], [0], [1], [0, 0, 1, 1], [], []>} : vector<8x50xbf16>, vector<50x30xbf16>, vector<8x30xf32> -> vector<8x30xf32>
    %c0_9 = arith.constant 0 : index
    %c0_10 = arith.constant 0 : index
    %14 = vector.load %arg5[%c0_9, %c0_10] : memref<1x30xf32, #tpu.memory_space<vmem>>, vector<1x30xf32>
    %15 = vector.broadcast %14 : vector<1x30xf32> to vector<8x30xf32>
    %16 = arith.addf %13, %15 : vector<8x30xf32>
    %cst_11 = arith.constant 0.000000e+00 : f32
    %17 = vector.broadcast %cst_11 : f32 to vector<8x30xf32>
    %18 = arith.maximumf %16, %17 : vector<8x30xf32>
    %19 = arith.truncf %18 : vector<8x30xf32> to vector<8x30xbf16>
    %c0_12 = arith.constant 0 : index
    %c0_13 = arith.constant 0 : index
    %20 = vector.load %arg6[%c0_12, %c0_13] : memref<30x4xf32, #tpu.memory_space<vmem>>, vector<30x4xf32>
    %21 = arith.truncf %20 : vector<30x4xf32> to vector<30x4xbf16>
    %cst_14 = arith.constant dense<0.000000e+00> : vector<8x4xf32>
    %22 = tpu.matmul %19, %21, %cst_14 {dimension_numbers = #tpu.dot_dimension_numbers<[1], [0], [0], [1], [0, 0, 1, 1], [], []>} : vector<8x30xbf16>, vector<30x4xbf16>, vector<8x4xf32> -> vector<8x4xf32>
    %c0_15 = arith.constant 0 : index
    %c0_16 = arith.constant 0 : index
    %23 = vector.load %arg7[%c0_15, %c0_16] : memref<1x4xf32, #tpu.memory_space<vmem>>, vector<1x4xf32>
    %24 = vector.broadcast %23 : vector<1x4xf32> to vector<8x4xf32>
    %25 = arith.addf %22, %24 : vector<8x4xf32>
    %c0_17 = arith.constant 0 : index
    %c0_18 = arith.constant 0 : index
    %26 = vector.load %arg8[%c0_17, %c0_18] : memref<8x4xf32, #tpu.memory_space<vmem>>, vector<8x4xf32>
    tpu.vector_store %arg8[%c0_17, %c0_18], %25 {strides = array<i32>} : memref<8x4xf32, #tpu.memory_space<vmem>>, vector<8x4xf32>,
    return
  }
  func.func @transform_0(%arg0: i32) -> (i32, i32) {
    %c0_i32 = arith.constant 0 : i32
    %c0_i32_0 = arith.constant 0 : i32
    return %arg0, %c0_i32 : i32, i32
  }
  func.func @transform_1(%arg0: i32) -> (i32, i32) {
    %c0_i32 = arith.constant 0 : i32
    %c0_i32_0 = arith.constant 0 : i32
    %c0_i32_1 = arith.constant 0 : i32
    return %c0_i32, %c0_i32_0 : i32, i32
  }
  func.func @transform_2(%arg0: i32) -> (i32, i32) {
    %c0_i32 = arith.constant 0 : i32
    %c0_i32_0 = arith.constant 0 : i32
    %c0_i32_1 = arith.constant 0 : i32
    return %c0_i32, %c0_i32_0 : i32, i32
  }
  func.func @transform_3(%arg0: i32) -> (i32, i32) {
    %c0_i32 = arith.constant 0 : i32
    %c0_i32_0 = arith.constant 0 : i32
    %c0_i32_1 = arith.constant 0 : i32
    return %c0_i32, %c0_i32_0 : i32, i32
  }
  func.func @transform_4(%arg0: i32) -> (i32, i32) {
    %c0_i32 = arith.constant 0 : i32
    %c0_i32_0 = arith.constant 0 : i32
    %c0_i32_1 = arith.constant 0 : i32
    return %c0_i32, %c0_i32_0 : i32, i32
  }
  func.func @transform_5(%arg0: i32) -> (i32, i32) {
    %c0_i32 = arith.constant 0 : i32
    %c0_i32_0 = arith.constant 0 : i32
    %c0_i32_1 = arith.constant 0 : i32
    return %c0_i32, %c0_i32_0 : i32, i32
  }
  func.func @transform_6(%arg0: i32) -> (i32, i32) {
    %c0_i32 = arith.constant 0 : i32
    %c0_i32_0 = arith.constant 0 : i32
    %c0_i32_1 = arith.constant 0 : i32
    return %c0_i32, %c0_i32_0 : i32, i32
  }
  func.func @transform_7(%arg0: i32) -> (i32, i32) {
    %c0_i32 = arith.constant 0 : i32
    %c0_i32_0 = arith.constant 0 : i32
    return %arg0, %c0_i32 : i32, i32
  }
}

</mosaic_0001>

<llo_original>
// kernel: net_forward.1
$region0: #{net_forward.1}
  #allocation0 [shape = 'u32[]', space=smem, size = 0x4, offset = 0x4, fixed_abs, tag = 'smem constant byte address 0x4 - core index']
  #allocation1 [shape = 'u32[72,128]{1,0:T(1,128)}', space=vmem, size = 0x9000, scoped, tag = 'internal scratch']
  %s0 = inlined_call_operand.vmem [shape: f32[8,768], index: 0, kind: input, shape index: {}]
  %s1 = inlined_call_operand.vmem [shape: f32[768,50], index: 1, kind: input, shape index: {}]
  %s2 = inlined_call_operand.vmem [shape: f32[1,50], index: 2, kind: input, shape index: {}]
  %s3 = inlined_call_operand.vmem [shape: f32[50,30], index: 3, kind: input, shape index: {}]
  %s4 = inlined_call_operand.vmem [shape: f32[1,30], index: 4, kind: input, shape index: {}]
  %s5 = inlined_call_operand.vmem [shape: f32[30,4], index: 5, kind: input, shape index: {}]
  %s6 = inlined_call_operand.vmem [shape: f32[1,4], index: 6, kind: input, shape index: {}]
  %s7 = inlined_call_operand.vmem [shape: f32[8,4], index: 7, kind: output, shape index: {}]
  %s8 = sld [smem:[#allocation0]]
  $region38: #{net_forward.1} parent=0
    _
  %s10 = ssub.s32 1, %s8
  %s11 = scalar_select 0, %s10, %s8
  // Predicated region
  $region2: #{net_forward.1} parent=0 // pred_check
    _
  $region3: #{net_forward.1} parent=0 // pred_check_branch
    %13 = sbr.rel (0) target = $region5
  $region4: #{net_forward.1} parent=0 // pred_region
    _
  $region5: #{net_forward.1} parent=0 // pred_fallthru
    _
  // Predicated region
  $region6: #{net_forward.1} parent=0 // pred_check
    _
  $region7: #{net_forward.1} parent=0 // pred_check_branch
    %15 = sbr.rel (0) target = $region9
  $region8: #{net_forward.1} parent=0 // pred_region
    _
  $region9: #{net_forward.1} parent=0 // pred_fallthru
    _
  // Predicated region
  $region10: #{net_forward.1} parent=0 // pred_check
    _
  $region11: #{net_forward.1} parent=0 // pred_check_branch
    %17 = sbr.rel (0) target = $region13
  $region12: #{net_forward.1} parent=0 // pred_region
    _
  $region13: #{net_forward.1} parent=0 // pred_fallthru
    _
  // Predicated region
  $region14: #{net_forward.1} parent=0 // pred_check
    _
  $region15: #{net_forward.1} parent=0 // pred_check_branch
    %19 = sbr.rel (0) target = $region17
  $region16: #{net_forward.1} parent=0 // pred_region
    _
  $region17: #{net_forward.1} parent=0 // pred_fallthru
    _
  // Predicated region
  $region18: #{net_forward.1} parent=0 // pred_check
    _
  $region19: #{net_forward.1} parent=0 // pred_check_branch
    %21 = sbr.rel (0) target = $region21
  $region20: #{net_forward.1} parent=0 // pred_region
    _
  $region21: #{net_forward.1} parent=0 // pred_fallthru
    _
  // Predicated region
  $region22: #{net_forward.1} parent=0 // pred_check
    _
  $region23: #{net_forward.1} parent=0 // pred_check_branch
    %23 = sbr.rel (0) target = $region25
  $region24: #{net_forward.1} parent=0 // pred_region
    _
  $region25: #{net_forward.1} parent=0 // pred_fallthru
    _
  // Predicated region
  $region26: #{net_forward.1} parent=0 // pred_check
    _
  $region27: #{net_forward.1} parent=0 // pred_check_branch
    %25 = sbr.rel (0) target = $region29
  $region28: #{net_forward.1} parent=0 // pred_region
    _
  $region29: #{net_forward.1} parent=0 // pred_fallthru
    _
  %v27 = vld [vmem:[%s0] sm:$0xff]
  %v28 = vld [vmem:[%s0 + $0x8] sm:$0xff]
  %v29 = vld [vmem:[%s0 + $0x10] sm:$0xff]
  %v30 = vld [vmem:[%s0 + $0x18] sm:$0xff]
  %v31 = vld [vmem:[%s0 + $0x20] sm:$0xff]
  %v32 = vld [vmem:[%s0 + $0x28] sm:$0xff]
  %v33 = vpack.c.bf16 %v27, %v27
  %v34 = vpack.c.bf16 %v28, %v28
  %v35 = vpack.c.bf16 %v29, %v29
  %v36 = vpack.c.bf16 %v30, %v30
  %v37 = vpack.c.bf16 %v31, %v31
  %v38 = vpack.c.bf16 %v32, %v32
  %v39 = vld [vmem:[%s1] sm:$0xff]
  %v40 = vld [vmem:[%s1 + $0x8] sm:$0xff]
  %v41 = vld [vmem:[%s1 + $0x10] sm:$0xff]
  %v42 = vld [vmem:[%s1 + $0x18] sm:$0xff]
  %v43 = vld [vmem:[%s1 + $0x20] sm:$0xff]
  %v44 = vld [vmem:[%s1 + $0x28] sm:$0xff]
  %v45 = vld [vmem:[%s1 + $0x30] sm:$0xff]
  %v46 = vld [vmem:[%s1 + $0x38] sm:$0xff]
  %v47 = vld [vmem:[%s1 + $0x40] sm:$0xff]
  %v48 = vld [vmem:[%s1 + $0x48] sm:$0xff]
  %v49 = vld [vmem:[%s1 + $0x50] sm:$0xff]
  %v50 = vld [vmem:[%s1 + $0x58] sm:$0xff]
  %v51 = vld [vmem:[%s1 + $0x60] sm:$0xff]
  %v52 = vld [vmem:[%s1 + $0x68] sm:$0xff]
  %v53 = vld [vmem:[%s1 + $0x70] sm:$0xff]
  %v54 = vld [vmem:[%s1 + $0x78] sm:$0xff]
  %v55 = vld [vmem:[%s1 + $0x80] sm:$0xff]
  %v56 = vld [vmem:[%s1 + $0x88] sm:$0xff]
  %v57 = vld [vmem:[%s1 + $0x90] sm:$0xff]
  %v58 = vld [vmem:[%s1 + $0x98] sm:$0xff]
  %v59 = vld [vmem:[%s1 + $0xa0] sm:$0xff]
  %v60 = vld [vmem:[%s1 + $0xa8] sm:$0xff]
  %v61 = vld [vmem:[%s1 + $0xb0] sm:$0xff]
  %v62 = vld [vmem:[%s1 + $0xb8] sm:$0xff]
  %v63 = vld [vmem:[%s1 + $0xc0] sm:$0xff]
  %v64 = vld [vmem:[%s1 + $0xc8] sm:$0xff]
  %v65 = vld [vmem:[%s1 + $0xd0] sm:$0xff]
  %v66 = vld [vmem:[%s1 + $0xd8] sm:$0xff]
  %v67 = vld [vmem:[%s1 + $0xe0] sm:$0xff]
  %v68 = vld [vmem:[%s1 + $0xe8] sm:$0xff]
  %v69 = vld [vmem:[%s1 + $0xf0] sm:$0xff]
  %v70 = vld [vmem:[%s1 + $0xf8] sm:$0xff]
  %v71 = vld [vmem:[%s1 + $0x100] sm:$0xff]
  %v72 = vld [vmem:[%s1 + $0x108] sm:$0xff]
  %v73 = vld [vmem:[%s1 + $0x110] sm:$0xff]
  %v74 = vld [vmem:[%s1 + $0x118] sm:$0xff]
  %v75 = vld [vmem:[%s1 + $0x120] sm:$0xff]
  %v76 = vld [vmem:[%s1 + $0x128] sm:$0xff]
  %v77 = vld [vmem:[%s1 + $0x130] sm:$0xff]
  %v78 = vld [vmem:[%s1 + $0x138] sm:$0xff]
  %v79 = vld [vmem:[%s1 + $0x140] sm:$0xff]
  %v80 = vld [vmem:[%s1 + $0x148] sm:$0xff]
  %v81 = vld [vmem:[%s1 + $0x150] sm:$0xff]
  %v82 = vld [vmem:[%s1 + $0x158] sm:$0xff]
  %v83 = vld [vmem:[%s1 + $0x160] sm:$0xff]
  %v84 = vld [vmem:[%s1 + $0x168] sm:$0xff]
  %v85 = vld [vmem:[%s1 + $0x170] sm:$0xff]
  %v86 = vld [vmem:[%s1 + $0x178] sm:$0xff]
  %v87 = vld [vmem:[%s1 + $0x180] sm:$0xff]
  %v88 = vld [vmem:[%s1 + $0x188] sm:$0xff]
  %v89 = vld [vmem:[%s1 + $0x190] sm:$0xff]
  %v90 = vld [vmem:[%s1 + $0x198] sm:$0xff]
  %v91 = vld [vmem:[%s1 + $0x1a0] sm:$0xff]
  %v92 = vld [vmem:[%s1 + $0x1a8] sm:$0xff]
  %v93 = vld [vmem:[%s1 + $0x1b0] sm:$0xff]
  %v94 = vld [vmem:[%s1 + $0x1b8] sm:$0xff]
  %v95 = vld [vmem:[%s1 + $0x1c0] sm:$0xff]
  %v96 = vld [vmem:[%s1 + $0x1c8] sm:$0xff]
  %v97 = vld [vmem:[%s1 + $0x1d0] sm:$0xff]
  %v98 = vld [vmem:[%s1 + $0x1d8] sm:$0xff]
  %v99 = vld [vmem:[%s1 + $0x1e0] sm:$0xff]
  %v100 = vld [vmem:[%s1 + $0x1e8] sm:$0xff]
  %v101 = vld [vmem:[%s1 + $0x1f0] sm:$0xff]
  %v102 = vld [vmem:[%s1 + $0x1f8] sm:$0xff]
  %v103 = vld [vmem:[%s1 + $0x200] sm:$0xff]
  %v104 = vld [vmem:[%s1 + $0x208] sm:$0xff]
  %v105 = vld [vmem:[%s1 + $0x210] sm:$0xff]
  %v106 = vld [vmem:[%s1 + $0x218] sm:$0xff]
  %v107 = vld [vmem:[%s1 + $0x220] sm:$0xff]
  %v108 = vld [vmem:[%s1 + $0x228] sm:$0xff]
  %v109 = vld [vmem:[%s1 + $0x230] sm:$0xff]
  %v110 = vld [vmem:[%s1 + $0x238] sm:$0xff]
  %v111 = vld [vmem:[%s1 + $0x240] sm:$0xff]
  %v112 = vld [vmem:[%s1 + $0x248] sm:$0xff]
  %v113 = vld [vmem:[%s1 + $0x250] sm:$0xff]
  %v114 = vld [vmem:[%s1 + $0x258] sm:$0xff]
  %v115 = vld [vmem:[%s1 + $0x260] sm:$0xff]
  %v116 = vld [vmem:[%s1 + $0x268] sm:$0xff]
  %v117 = vld [vmem:[%s1 + $0x270] sm:$0xff]
  %v118 = vld [vmem:[%s1 + $0x278] sm:$0xff]
  %v119 = vld [vmem:[%s1 + $0x280] sm:$0xff]
  %v120 = vld [vmem:[%s1 + $0x288] sm:$0xff]
  %v121 = vld [vmem:[%s1 + $0x290] sm:$0xff]
  %v122 = vld [vmem:[%s1 + $0x298] sm:$0xff]
  %v123 = vld [vmem:[%s1 + $0x2a0] sm:$0xff]
  %v124 = vld [vmem:[%s1 + $0x2a8] sm:$0xff]
  %v125 = vld [vmem:[%s1 + $0x2b0] sm:$0xff]
  %v126 = vld [vmem:[%s1 + $0x2b8] sm:$0xff]
  %v127 = vld [vmem:[%s1 + $0x2c0] sm:$0xff]
  %v128 = vld [vmem:[%s1 + $0x2c8] sm:$0xff]
  %v129 = vld [vmem:[%s1 + $0x2d0] sm:$0xff]
  %v130 = vld [vmem:[%s1 + $0x2d8] sm:$0xff]
  %v131 = vld [vmem:[%s1 + $0x2e0] sm:$0xff]
  %v132 = vld [vmem:[%s1 + $0x2e8] sm:$0xff]
  %v133 = vld [vmem:[%s1 + $0x2f0] sm:$0xff]
  %v134 = vld [vmem:[%s1 + $0x2f8] sm:$0xff]
  %v135 = vpack.c.bf16 %v40, %v39
  %v136 = vpack.c.bf16 %v42, %v41
  %v137 = vpack.c.bf16 %v44, %v43
  %v138 = vpack.c.bf16 %v46, %v45
  %v139 = vpack.c.bf16 %v48, %v47
  %v140 = vpack.c.bf16 %v50, %v49
  %v141 = vpack.c.bf16 %v52, %v51
  %v142 = vpack.c.bf16 %v54, %v53
  %v143 = vpack.c.bf16 %v56, %v55
  %v144 = vpack.c.bf16 %v58, %v57
  %v145 = vpack.c.bf16 %v60, %v59
  %v146 = vpack.c.bf16 %v62, %v61
  %v147 = vpack.c.bf16 %v64, %v63
  %v148 = vpack.c.bf16 %v66, %v65
  %v149 = vpack.c.bf16 %v68, %v67
  %v150 = vpack.c.bf16 %v70, %v69
  %v151 = vpack.c.bf16 %v72, %v71
  %v152 = vpack.c.bf16 %v74, %v73
  %v153 = vpack.c.bf16 %v76, %v75
  %v154 = vpack.c.bf16 %v78, %v77
  %v155 = vpack.c.bf16 %v80, %v79
  %v156 = vpack.c.bf16 %v82, %v81
  %v157 = vpack.c.bf16 %v84, %v83
  %v158 = vpack.c.bf16 %v86, %v85
  %v159 = vpack.c.bf16 %v88, %v87
  %v160 = vpack.c.bf16 %v90, %v89
  %v161 = vpack.c.bf16 %v92, %v91
  %v162 = vpack.c.bf16 %v94, %v93
  %v163 = vpack.c.bf16 %v96, %v95
  %v164 = vpack.c.bf16 %v98, %v97
  %v165 = vpack.c.bf16 %v100, %v99
  %v166 = vpack.c.bf16 %v102, %v101
  %v167 = vpack.c.bf16 %v104, %v103
  %v168 = vpack.c.bf16 %v106, %v105
  %v169 = vpack.c.bf16 %v108, %v107
  %v170 = vpack.c.bf16 %v110, %v109
  %v171 = vpack.c.bf16 %v112, %v111
  %v172 = vpack.c.bf16 %v114, %v113
  %v173 = vpack.c.bf16 %v116, %v115
  %v174 = vpack.c.bf16 %v118, %v117
  %v175 = vpack.c.bf16 %v120, %v119
  %v176 = vpack.c.bf16 %v122, %v121
  %v177 = vpack.c.bf16 %v124, %v123
  %v178 = vpack.c.bf16 %v126, %v125
  %v179 = vpack.c.bf16 %v128, %v127
  %v180 = vpack.c.bf16 %v130, %v129
  %v181 = vpack.c.bf16 %v132, %v131
  %v182 = vpack.c.bf16 %v134, %v133
  %v183 = vld [vmem:[%s2] sm:$0x1]
  %v185 = vperm.slane %v183, 0
  %187 = vmatpush.bf16.msra.mxu0 %v142
  %188 = vmatpush.bf16.msra.mxu0 %v141
  %189 = vmatpush.bf16.msra.mxu0 %v140
  %190 = vmatpush.bf16.msra.mxu0 %v139
  %191 = vmatpush.bf16.msra.mxu0 %v138
  %192 = vmatpush.bf16.msra.mxu0 %v137
  %193 = vmatpush.bf16.msra.mxu0 %v136
  %194 = vmatpush.bf16.msra.mxu0 %v135
  %195 = vmatmul.bf16.gmra.mxu0 %v33
  %v196 = vpop.f32.mrf.mxu0
  %v197 = vadd.f32 %v185, %v196
  %v198 = vpop.f32.mrf.mxu0
  %199 = vdwg.mxu0
  %200 = vmatpush.bf16.msra.mxu0 %v150
  %201 = vmatpush.bf16.msra.mxu0 %v149
  %202 = vmatpush.bf16.msra.mxu0 %v148
  %203 = vmatpush.bf16.msra.mxu0 %v147
  %204 = vmatpush.bf16.msra.mxu0 %v146
  %205 = vmatpush.bf16.msra.mxu0 %v145
  %206 = vmatpush.bf16.msra.mxu0 %v144
  %207 = vmatpush.bf16.msra.mxu0 %v143
  %208 = vmatmul.bf16.gmra.mxu0 %v34
  %v209 = vpop.f32.mrf.mxu0
  %v210 = vadd.f32 %v197, %v209
  %v211 = vpop.f32.mrf.mxu0
  %212 = vdwg.mxu0
  %213 = vmatpush.bf16.msra.mxu0 %v158
  %214 = vmatpush.bf16.msra.mxu0 %v157
  %215 = vmatpush.bf16.msra.mxu0 %v156
  %216 = vmatpush.bf16.msra.mxu0 %v155
  %217 = vmatpush.bf16.msra.mxu0 %v154
  %218 = vmatpush.bf16.msra.mxu0 %v153
  %219 = vmatpush.bf16.msra.mxu0 %v152
  %220 = vmatpush.bf16.msra.mxu0 %v151
  %221 = vmatmul.bf16.gmra.mxu0 %v35
  %v222 = vpop.f32.mrf.mxu0
  %v223 = vadd.f32 %v210, %v222
  %v224 = vpop.f32.mrf.mxu0
  %225 = vdwg.mxu0
  %226 = vmatpush.bf16.msra.mxu0 %v166
  %227 = vmatpush.bf16.msra.mxu0 %v165
  %228 = vmatpush.bf16.msra.mxu0 %v164
  %229 = vmatpush.bf16.msra.mxu0 %v163
  %230 = vmatpush.bf16.msra.mxu0 %v162
  %231 = vmatpush.bf16.msra.mxu0 %v161
  %232 = vmatpush.bf16.msra.mxu0 %v160
  %233 = vmatpush.bf16.msra.mxu0 %v159
  %234 = vmatmul.bf16.gmra.mxu0 %v36
  %v235 = vpop.f32.mrf.mxu0
  %v236 = vadd.f32 %v223, %v235
  %v237 = vpop.f32.mrf.mxu0
  %238 = vdwg.mxu0
  %239 = vmatpush.bf16.msra.mxu0 %v174
  %240 = vmatpush.bf16.msra.mxu0 %v173
  %241 = vmatpush.bf16.msra.mxu0 %v172
  %242 = vmatpush.bf16.msra.mxu0 %v171
  %243 = vmatpush.bf16.msra.mxu0 %v170
  %244 = vmatpush.bf16.msra.mxu0 %v169
  %245 = vmatpush.bf16.msra.mxu0 %v168
  %246 = vmatpush.bf16.msra.mxu0 %v167
  %247 = vmatmul.bf16.gmra.mxu0 %v37
  %v248 = vpop.f32.mrf.mxu0
  %v249 = vadd.f32 %v236, %v248
  %v250 = vpop.f32.mrf.mxu0
  %251 = vdwg.mxu0
  %252 = vmatpush.bf16.msra.mxu0 %v182
  %253 = vmatpush.bf16.msra.mxu0 %v181
  %254 = vmatpush.bf16.msra.mxu0 %v180
  %255 = vmatpush.bf16.msra.mxu0 %v179
  %256 = vmatpush.bf16.msra.mxu0 %v178
  %257 = vmatpush.bf16.msra.mxu0 %v177
  %258 = vmatpush.bf16.msra.mxu0 %v176
  %259 = vmatpush.bf16.msra.mxu0 %v175
  %260 = vmatmul.bf16.gmra.mxu0 %v38
  %v261 = vpop.f32.mrf.mxu0
  %v262 = vadd.f32 %v249, %v261
  %v263 = vpop.f32.mrf.mxu0
  %264 = vdwg.mxu0
  %v265 = vmax.f32 %v262, 0.0
  %v266 = vpack.c.bf16 %v265, %v265
  %v267 = vld [vmem:[%s3] sm:$0xff]
  %v268 = vld [vmem:[%s3 + $0x8] sm:$0xff]
  %v269 = vld [vmem:[%s3 + $0x10] sm:$0xff]
  %v270 = vld [vmem:[%s3 + $0x18] sm:$0xff]
  %v271 = vld [vmem:[%s3 + $0x20] sm:$0xff]
  %v272 = vld [vmem:[%s3 + $0x28] sm:$0xff]
  %v273 = vld [vmem:[%s3 + $0x30] sm:$0x3]
  %v274 = vpack.c.bf16 %v268, %v267
  %v275 = vpack.c.bf16 %v270, %v269
  %v276 = vpack.c.bf16 %v272, %v271
  %v277 = vpack.c.bf16 %v273, %v273
  %v278 = vld [vmem:[%s4] sm:$0x1]
  %v280 = vperm.slane %v278, 0
  %vm282 = vcmask 408576
  %v284 = vsel %vm282, %v266, 0
  %vm286 = vcmask 1040384
  %v288 = vsel %vm286, %v277, 0
  %290 = vmatpush.bf16.msra.mxu0 0
  %291 = vmatpush.bf16.msra.mxu0 0
  %292 = vmatpush.bf16.msra.mxu0 0
  %293 = vmatpush.bf16.msra.mxu0 0
  %294 = vmatpush.bf16.msra.mxu0 %v288
  %295 = vmatpush.bf16.msra.mxu0 %v276
  %296 = vmatpush.bf16.msra.mxu0 %v275
  %297 = vmatpush.bf16.msra.mxu0 %v274
  %298 = vmatmul.bf16.gmra.mxu0 %v284
  %v299 = vpop.f32.mrf.mxu0
  %v300 = vadd.f32 %v280, %v299
  %v301 = vpop.f32.mrf.mxu0
  %302 = vdwg.mxu0
  %v303 = vmax.f32 %v300, 0.0
  %v304 = vpack.c.bf16 %v303, %v303
  %v305 = vld [vmem:[%s5] sm:$0xff]
  %v306 = vld [vmem:[%s5 + $0x8] sm:$0xff]
  %v307 = vld [vmem:[%s5 + $0x10] sm:$0xff]
  %v308 = vld [vmem:[%s5 + $0x18] sm:$0x3f]
  %v309 = vpack.c.bf16 %v306, %v305
  %v310 = vpack.c.bf16 %v308, %v307
  %v311 = vld [vmem:[%s6] sm:$0x1]
  %v313 = vperm.slane %v311, 0
  %vm315 = vcmask 244736
  %v317 = vsel %vm315, %v304, 0
  %vm319 = vcmask 1046528
  %v321 = vsel %vm319, %v310, 0
  %323 = vmatpush.bf16.msra.mxu0 0
  %324 = vmatpush.bf16.msra.mxu0 0
  %325 = vmatpush.bf16.msra.mxu0 0
  %326 = vmatpush.bf16.msra.mxu0 0
  %327 = vmatpush.bf16.msra.mxu0 0
  %328 = vmatpush.bf16.msra.mxu0 0
  %329 = vmatpush.bf16.msra.mxu0 %v321
  %330 = vmatpush.bf16.msra.mxu0 %v309
  %331 = vmatmul.bf16.gmra.mxu0 %v317
  %v332 = vpop.f32.mrf.mxu0
  %v333 = vadd.f32 %v313, %v332
  %v334 = vpop.f32.mrf.mxu0
  %335 = vdwg.mxu0
  %vm336 = vcmask 31744
  %337 = vst.msk [vmem:[%s7] sm:$0xff] %vm336, %v333
  // Predicated region
  $region30: #{net_forward.1} parent=0 // pred_check
    _
  $region31: #{net_forward.1} parent=0 // pred_check_branch
    %339 = sbr.rel (0) target = $region33
  $region32: #{net_forward.1} parent=0 // pred_region
    _
  $region33: #{net_forward.1} parent=0 // pred_fallthru
    _
  // Predicated region
  $region34: #{net_forward.1} parent=0 // pred_check
    _
  $region35: #{net_forward.1} parent=0 // pred_check_branch
    %341 = sbr.rel (0) target = $region37
  $region36: #{net_forward.1} parent=0 // pred_region
    _
  $region37: #{net_forward.1} parent=0 // pred_fallthru
    _

</llo_original>
